<compile_context>
chip_gen: v7x
topology: tpu7x:2x2x1
jax: 0.10.0
libtpu: 0.0.40
codegen_flags: <defaults>
</compile_context>

<pallas_src>
import functools

import jax
import jax.numpy as jnp
from jax.experimental import pallas as pl
from jax.experimental.pallas import tpu as pltpu

IN_FEATURES = 18
HIDDEN = 128
OUT_FEATURES = 9
PAD_OUT = 128          # 9 -> 128 output lanes (lane-dense, unmasked stores)
MAX_TILE_B = 1024      # batch rows per grid step (few MiB of VMEM at most)


def _round_up(n, m):
    return ((n + m - 1) // m) * m


def _default_tile_b(batch):
    """Large tiles (amortize ~0.35us/step), but aim for >=2 grid steps so both
    v7x TensorCores engage; multiple of 16 for bf16 sublane packing."""
    half = -(-batch // 2)
    return max(16, min(MAX_TILE_B, _round_up(half, 16)))


def _mlp_kernel(x_ref, w1_ref, w23_ref, w4_ref, b_ref, o_ref):
    """Fused 4-layer MLP for one batch tile.

    Layers 1-3: bf16 operands on the MXU, f32 accumulation.  Layer 4 (output
    head) stays f32.  Bias adds / ReLUs in f32 on the VPU.  Final store casts
    to o_ref.dtype (bf16 by default) -> halved HBM writeback.
    """
    b = b_ref[...]                                   # (8,128) f32, one vreg
    x = x_ref[...].astype(jnp.bfloat16)              # in-register cast, VPU
    h = jnp.dot(x, w1_ref[...], preferred_element_type=jnp.float32)
    h = jnp.maximum(h + b[0:1, :], 0.0)
    h = jnp.dot(h.astype(jnp.bfloat16), w23_ref[0],
                preferred_element_type=jnp.float32)
    h = jnp.maximum(h + b[1:2, :], 0.0)
    h = jnp.dot(h.astype(jnp.bfloat16), w23_ref[1],
                preferred_element_type=jnp.float32)
    h = jnp.maximum(h + b[2:3, :], 0.0)
    out = jnp.dot(h, w4_ref[...], preferred_element_type=jnp.float32) + b[3:4, :]
    o_ref[...] = out.astype(o_ref.dtype)


def init_dqn_params(key):
    """nn.Linear-style init: U(-1/sqrt(fan_in), 1/sqrt(fan_in)).

    Weights stored as (in, out), so y = x @ W + b == torch's x @ W.T + b."""
    keys = jax.random.split(key, 8)

    def linear(kw, kb, fan_in, fan_out):
        bound = 1.0 / jnp.sqrt(jnp.float32(fan_in))
        w = jax.random.uniform(kw, (fan_in, fan_out), jnp.float32, -bound, bound)
        b = jax.random.uniform(kb, (fan_out,), jnp.float32, -bound, bound)
        return w, b

    w1, b1 = linear(keys[0], keys[1], IN_FEATURES, HIDDEN)
    w2, b2 = linear(keys[2], keys[3], HIDDEN, HIDDEN)
    w3, b3 = linear(keys[4], keys[5], HIDDEN, HIDDEN)
    w4, b4 = linear(keys[6], keys[7], HIDDEN, OUT_FEATURES)
    return dict(w1=w1, b1=b1, w2=w2, b2=b2, w3=w3, b3=b3, w4=w4, b4=b4)


def prepare_params(params):
    """One-time packing done at init (NOT per forward call):
      * w1 -> bf16 (18,128)
      * w2,w3 -> one bf16 (2,128,128) stack
      * w4 -> f32, zero-padded to (128,128) output lanes (kept f32 for
        action-selection precision; cost is negligible)
      * biases -> one f32 (8,128) block (rows 0..3 = b1..b4, b4 lane-padded)
    """
    w4p = (jnp.zeros((HIDDEN, PAD_OUT), jnp.float32)
           .at[:, :OUT_FEATURES].set(params["w4"]))
    b = jnp.zeros((8, PAD_OUT), jnp.float32)
    b = b.at[0, :HIDDEN].set(params["b1"])
    b = b.at[1, :HIDDEN].set(params["b2"])
    b = b.at[2, :HIDDEN].set(params["b3"])
    b = b.at[3, :OUT_FEATURES].set(params["b4"])
    return dict(
        w1=params["w1"].astype(jnp.bfloat16),                          # (18,128)
        w23=jnp.stack([params["w2"], params["w3"]]).astype(jnp.bfloat16),  # (2,128,128)
        w4=w4p,                                                         # (128,128) f32
        b=b,                                                            # (8,128) f32
    )


def _forward_padded(x, prepared, tile_b, out_dtype):
    """Traced core: returns the lane-dense (B_pad, 128) output slab."""
    B = x.shape[0]
    x_flat = x.reshape(B, -1).astype(jnp.float32)   # row-major flatten == nn.Flatten
    assert x_flat.shape[1] == IN_FEATURES

    if tile_b is None:
        tile_b = _default_tile_b(B)
    tile_b = max(16, _round_up(int(tile_b), 16))
    B_pad = _round_up(B, tile_b)
    if B_pad != B:
        x_flat = jnp.pad(x_flat, ((0, B_pad - B), (0, 0)))   # tiny row-pad only
    grid = (B_pad // tile_b,)

    out_dtype = jnp.dtype(out_dtype)
    flops = 2 * B_pad * (IN_FEATURES * HIDDEN
                         + 2 * HIDDEN * HIDDEN
                         + HIDDEN * PAD_OUT)
    bytes_accessed = (B_pad * IN_FEATURES * 4                 # x in (f32)
                      + B_pad * PAD_OUT * out_dtype.itemsize  # out slab
                      + IN_FEATURES * HIDDEN * 2              # w1 bf16
                      + 2 * HIDDEN * HIDDEN * 2               # w2/w3 bf16
                      + HIDDEN * PAD_OUT * 4                  # w4 f32
                      + 8 * PAD_OUT * 4)                      # biases

    out_p = pl.pallas_call(
        _mlp_kernel,
        out_shape=jax.ShapeDtypeStruct((B_pad, PAD_OUT), out_dtype),
        grid=grid,
        in_specs=[
            pl.BlockSpec((tile_b, IN_FEATURES), lambda i: (i, 0)),   # x tile
            pl.BlockSpec((IN_FEATURES, HIDDEN), lambda i: (0, 0)),   # w1 (resident)
            pl.BlockSpec((2, HIDDEN, HIDDEN), lambda i: (0, 0, 0)),  # w2,w3 stack
            pl.BlockSpec((HIDDEN, PAD_OUT), lambda i: (0, 0)),       # w4 (padded)
            pl.BlockSpec((8, PAD_OUT), lambda i: (0, 0)),            # biases
        ],
        out_specs=pl.BlockSpec((tile_b, PAD_OUT), lambda i: (i, 0)),
        compiler_params=pltpu.CompilerParams(
            dimension_semantics=("parallel",)),
        cost_estimate=pl.CostEstimate(
            flops=flops, transcendentals=0, bytes_accessed=bytes_accessed),
    )(x_flat, prepared["w1"], prepared["w23"], prepared["w4"], prepared["b"])
    return out_p


@functools.partial(jax.jit, static_argnames=("tile_b", "out_dtype"))
def dqn_forward_padded(x, prepared, tile_b=None, out_dtype=jnp.bfloat16):
    """x: (B,3,3,2) -> (B_pad, 128) lane-dense slab (columns 0..8 are the
    Q-values).  Preferred entry point for perf-critical consumers: no slice
    copy is materialized."""
    return _forward_padded(x, prepared, tile_b, out_dtype)


@functools.partial(jax.jit, static_argnames=("tile_b", "out_dtype"))
def dqn_forward(x, prepared, tile_b=None, out_dtype=jnp.bfloat16):
    """Module-parity forward: x (B,3,3,2) -> (B,9) Q-values.
    Note: the [:B,:9] slice costs an extra read/write of the slab; use
    dqn_forward_padded / dqn_select_actions on hot paths."""
    out_p = _forward_padded(x, prepared, tile_b, out_dtype)
    return out_p[:x.shape[0], :OUT_FEATURES]


@functools.partial(jax.jit, static_argnames=("tile_b",))
def dqn_select_actions(x, prepared, tile_b=None):
    """Greedy action selection fused on the padded slab (no (B,9) copy)."""
    out_p = _forward_padded(x, prepared, tile_b, jnp.bfloat16)
    lane = jax.lax.broadcasted_iota(jnp.int32, out_p.shape, 1)
    neg = jnp.asarray(-jnp.inf, out_p.dtype)
    masked = jnp.where(lane < OUT_FEATURES, out_p, neg)
    return jnp.argmax(masked, axis=-1)[:x.shape[0]]


def _reference_forward_f32(x, params):
    """Pure-f32 JAX reference matching the PyTorch forward."""
    B = x.shape[0]
    h = x.reshape(B, -1).astype(jnp.float32)
    h = jax.nn.relu(h @ params["w1"] + params["b1"])
    h = jax.nn.relu(h @ params["w2"] + params["b2"])
    h = jax.nn.relu(h @ params["w3"] + params["b3"])
    return h @ params["w4"] + params["b4"]


def _reference_forward_mixed(x, params, out_dtype=jnp.bfloat16):
    """Reference mirroring the kernel's precision: bf16 operands for layers
    1-3 (f32 accumulation, f32 bias/ReLU), f32 output head, cast at the end."""
    bf = jnp.bfloat16
    B = x.shape[0]
    h = x.reshape(B, -1).astype(bf)
    h = jax.nn.relu(jnp.dot(h, params["w1"].astype(bf),
                            preferred_element_type=jnp.float32) + params["b1"])
    h = jax.nn.relu(jnp.dot(h.astype(bf), params["w2"].astype(bf),
                            preferred_element_type=jnp.float32) + params["b2"])
    h = jax.nn.relu(jnp.dot(h.astype(bf), params["w3"].astype(bf),
                            preferred_element_type=jnp.float32) + params["b3"])
    out = jnp.dot(h, params["w4"], preferred_element_type=jnp.float32) + params["b4"]
    return out.astype(out_dtype)


if __name__ == "__main__":
    key = jax.random.PRNGKey(0)
    k_params, k_x1, k_x2 = jax.random.split(key, 3)

    params = init_dqn_params(k_params)
    prepared = prepare_params(params)   # one-time packing (hoisted out of forward)

    # Small acting/inference batch: single 16-row tile, grid=(1,).
    x_small = jax.random.uniform(k_x1, (4, 3, 3, 2), jnp.float32)
    out_small = jax.block_until_ready(dqn_forward(x_small, prepared))

    # Replay-buffer-like batch: default tile picker splits it into 2 tiles
    # (grid=(2,), both v7x TensorCores engaged).
    x_big = jax.random.uniform(k_x2, (40, 3, 3, 2), jnp.float32)
    out_big = jax.block_until_ready(dqn_forward(x_big, prepared))

    # Explicit small-tile correctness case (multi-step grid with padding).
    out_big_t16 = jax.block_until_ready(dqn_forward(x_big, prepared, tile_b=16))

    for x, out in ((x_small, out_small), (x_big, out_big), (x_big, out_big_t16)):
        assert out.shape == (x.shape[0], OUT_FEATURES), out.shape
        out_f = out.astype(jnp.float32)
        ref_mixed = _reference_forward_mixed(x, params).astype(jnp.float32)
        assert jnp.allclose(out_f, ref_mixed, atol=2e-2, rtol=2e-2), \
            "mismatch vs mixed-precision reference"
        ref_f32 = _reference_forward_f32(x, params)
        assert jnp.allclose(out_f, ref_f32, atol=6e-2, rtol=6e-2), \
            "mismatch vs f32 reference"

    # f32-output path (for consumers needing full-precision Q-values).
    out_f32 = jax.block_until_ready(
        dqn_forward(x_small, prepared, out_dtype=jnp.float32))
    assert out_f32.dtype == jnp.float32
    assert jnp.allclose(out_f32,
                        _reference_forward_mixed(x_small, params, jnp.float32),
                        atol=1e-2, rtol=1e-2)

    # Fused greedy action selection on the padded slab (no (B,9) slice copy).
    actions = jax.block_until_ready(dqn_select_actions(x_big, prepared))
    assert actions.shape == (x_big.shape[0],)
    assert jnp.array_equal(actions, jnp.argmax(out_big.astype(jnp.float32), axis=-1))

    # Padded-slab entry point used directly.
    slab = jax.block_until_ready(dqn_forward_padded(x_big, prepared))
    assert slab.shape[1] == PAD_OUT and slab.shape[0] % 16 == 0

    print("KERNEL_OK")
</pallas_src>

<mosaic_0001>
module attributes {stable_mosaic.version = 11 : i64} {
  func.func @_mlp_kernel(%arg0: i32, %arg1: memref<16x18xf32, #tpu.memory_space<vmem>>, %arg2: memref<18x128xbf16, #tpu.memory_space<vmem>>, %arg3: memref<2x128x128xbf16, #tpu.memory_space<vmem>>, %arg4: memref<128x128xf32, #tpu.memory_space<vmem>>, %arg5: memref<8x128xf32, #tpu.memory_space<vmem>>, %arg6: memref<16x128xbf16, #tpu.memory_space<vmem>>) attributes {dimension_semantics = [#tpu.dimension_semantics<parallel>], iteration_bounds = array<i64: 1>, scalar_prefetch = 0 : i64, scratch_operands = 0 : i64, tpu.core_type = #tpu.core_type<tc>, window_params = [{transform_indices = @transform_0, window_bounds = array<i64: 16, 18>}, {pipeline_mode = #tpu.pipeline_mode<synchronous>, transform_indices = @transform_1, window_bounds = array<i64: 18, 128>}, {pipeline_mode = #tpu.pipeline_mode<synchronous>, transform_indices = @transform_2, window_bounds = array<i64: 2, 128, 128>}, {pipeline_mode = #tpu.pipeline_mode<synchronous>, transform_indices = @transform_3, window_bounds = array<i64: 128, 128>}, {pipeline_mode = #tpu.pipeline_mode<synchronous>, transform_indices = @transform_4, window_bounds = array<i64: 8, 128>}, {transform_indices = @transform_5, window_bounds = array<i64: 16, 128>}]} {
    %c0 = arith.constant 0 : index
    %c0_0 = arith.constant 0 : index
    %0 = vector.load %arg5[%c0, %c0_0] : memref<8x128xf32, #tpu.memory_space<vmem>>, vector<8x128xf32>
    %c0_1 = arith.constant 0 : index
    %c0_2 = arith.constant 0 : index
    %1 = vector.load %arg1[%c0_1, %c0_2] : memref<16x18xf32, #tpu.memory_space<vmem>>, vector<16x18xf32>
    %2 = arith.truncf %1 : vector<16x18xf32> to vector<16x18xbf16>
    %c0_3 = arith.constant 0 : index
    %c0_4 = arith.constant 0 : index
    %3 = vector.load %arg2[%c0_3, %c0_4] : memref<18x128xbf16, #tpu.memory_space<vmem>>, vector<18x128xbf16>
    %cst = arith.constant dense<0.000000e+00> : vector<16x128xf32>
    %4 = tpu.matmul %2, %3, %cst {dimension_numbers = #tpu.dot_dimension_numbers<[1], [0], [0], [1], [0, 0, 1, 1], [], []>} : vector<16x18xbf16>, vector<18x128xbf16>, vector<16x128xf32> -> vector<16x128xf32>
    %5 = vector.extract_strided_slice %0 {offsets = [0, 0], sizes = [1, 128], strides = [1, 1]} : vector<8x128xf32> to vector<1x128xf32>
    %6 = vector.broadcast %5 : vector<1x128xf32> to vector<16x128xf32>
    %7 = arith.addf %4, %6 : vector<16x128xf32>
    %cst_5 = arith.constant 0.000000e+00 : f32
    %8 = vector.broadcast %cst_5 : f32 to vector<16x128xf32>
    %9 = arith.maximumf %7, %8 : vector<16x128xf32>
    %10 = arith.truncf %9 : vector<16x128xf32> to vector<16x128xbf16>
    %c0_6 = arith.constant 0 : index
    %c0_7 = arith.constant 0 : index
    %c0_8 = arith.constant 0 : index
    %11 = vector.load %arg3[%c0_6, %c0_7, %c0_8] : memref<2x128x128xbf16, #tpu.memory_space<vmem>>, vector<1x128x128xbf16>
    %12 = vector.shape_cast %11 : vector<1x128x128xbf16> to vector<128x128xbf16>
    %cst_9 = arith.constant dense<0.000000e+00> : vector<16x128xf32>
    %13 = tpu.matmul %10, %12, %cst_9 {dimension_numbers = #tpu.dot_dimension_numbers<[1], [0], [0], [1], [0, 0, 1, 1], [], []>} : vector<16x128xbf16>, vector<128x128xbf16>, vector<16x128xf32> -> vector<16x128xf32>
    %14 = vector.extract_strided_slice %0 {offsets = [1, 0], sizes = [1, 128], strides = [1, 1]} : vector<8x128xf32> to vector<1x128xf32>
    %15 = vector.broadcast %14 : vector<1x128xf32> to vector<16x128xf32>
    %16 = arith.addf %13, %15 : vector<16x128xf32>
    %cst_10 = arith.constant 0.000000e+00 : f32
    %17 = vector.broadcast %cst_10 : f32 to vector<16x128xf32>
    %18 = arith.maximumf %16, %17 : vector<16x128xf32>
    %19 = arith.truncf %18 : vector<16x128xf32> to vector<16x128xbf16>
    %c1 = arith.constant 1 : index
    %c0_11 = arith.constant 0 : index
    %c0_12 = arith.constant 0 : index
    %20 = vector.load %arg3[%c1, %c0_11, %c0_12] : memref<2x128x128xbf16, #tpu.memory_space<vmem>>, vector<1x128x128xbf16>
    %21 = vector.shape_cast %20 : vector<1x128x128xbf16> to vector<128x128xbf16>
    %cst_13 = arith.constant dense<0.000000e+00> : vector<16x128xf32>
    %22 = tpu.matmul %19, %21, %cst_13 {dimension_numbers = #tpu.dot_dimension_numbers<[1], [0], [0], [1], [0, 0, 1, 1], [], []>} : vector<16x128xbf16>, vector<128x128xbf16>, vector<16x128xf32> -> vector<16x128xf32>
    %23 = vector.extract_strided_slice %0 {offsets = [2, 0], sizes = [1, 128], strides = [1, 1]} : vector<8x128xf32> to vector<1x128xf32>
    %24 = vector.broadcast %23 : vector<1x128xf32> to vector<16x128xf32>
    %25 = arith.addf %22, %24 : vector<16x128xf32>
    %cst_14 = arith.constant 0.000000e+00 : f32
    %26 = vector.broadcast %cst_14 : f32 to vector<16x128xf32>
    %27 = arith.maximumf %25, %26 : vector<16x128xf32>
    %c0_15 = arith.constant 0 : index
    %c0_16 = arith.constant 0 : index
    %28 = vector.load %arg4[%c0_15, %c0_16] : memref<128x128xf32, #tpu.memory_space<vmem>>, vector<128x128xf32>
    %cst_17 = arith.constant dense<0.000000e+00> : vector<16x128xf32>
    %29 = tpu.matmul %27, %28, %cst_17 {dimension_numbers = #tpu.dot_dimension_numbers<[1], [0], [0], [1], [0, 0, 1, 1], [], []>} : vector<16x128xf32>, vector<128x128xf32>, vector<16x128xf32> -> vector<16x128xf32>
    %30 = vector.extract_strided_slice %0 {offsets = [3, 0], sizes = [1, 128], strides = [1, 1]} : vector<8x128xf32> to vector<1x128xf32>
    %31 = vector.broadcast %30 : vector<1x128xf32> to vector<16x128xf32>
    %32 = arith.addf %29, %31 : vector<16x128xf32>
    %33 = arith.truncf %32 : vector<16x128xf32> to vector<16x128xbf16>
    %c0_18 = arith.constant 0 : index
    %c0_19 = arith.constant 0 : index
    %34 = vector.load %arg6[%c0_18, %c0_19] : memref<16x128xbf16, #tpu.memory_space<vmem>>, vector<16x128xbf16>
    tpu.vector_store %arg6[%c0_18, %c0_19], %33 {strides = array<i32>} : memref<16x128xbf16, #tpu.memory_space<vmem>>, vector<16x128xbf16>,
    return
  }
  func.func @transform_0(%arg0: i32) -> (i32, i32) {
    %c0_i32 = arith.constant 0 : i32
    %c0_i32_0 = arith.constant 0 : i32
    return %arg0, %c0_i32 : i32, i32
  }
  func.func @transform_1(%arg0: i32) -> (i32, i32) {
    %c0_i32 = arith.constant 0 : i32
    %c0_i32_0 = arith.constant 0 : i32
    %c0_i32_1 = arith.constant 0 : i32
    return %c0_i32, %c0_i32_0 : i32, i32
  }
  func.func @transform_2(%arg0: i32) -> (i32, i32, i32) {
    %c0_i32 = arith.constant 0 : i32
    %c0_i32_0 = arith.constant 0 : i32
    %c0_i32_1 = arith.constant 0 : i32
    %c0_i32_2 = arith.constant 0 : i32
    return %c0_i32, %c0_i32_0, %c0_i32_1 : i32, i32, i32
  }
  func.func @transform_3(%arg0: i32) -> (i32, i32) {
    %c0_i32 = arith.constant 0 : i32
    %c0_i32_0 = arith.constant 0 : i32
    %c0_i32_1 = arith.constant 0 : i32
    return %c0_i32, %c0_i32_0 : i32, i32
  }
  func.func @transform_4(%arg0: i32) -> (i32, i32) {
    %c0_i32 = arith.constant 0 : i32
    %c0_i32_0 = arith.constant 0 : i32
    %c0_i32_1 = arith.constant 0 : i32
    return %c0_i32, %c0_i32_0 : i32, i32
  }
  func.func @transform_5(%arg0: i32) -> (i32, i32) {
    %c0_i32 = arith.constant 0 : i32
    %c0_i32_0 = arith.constant 0 : i32
    return %arg0, %c0_i32 : i32, i32
  }
}

</mosaic_0001>

<llo_original>
// kernel: dqn_forward.1
$region0: #{dqn_forward.1}
  #allocation0 [shape = 'u32[]', space=smem, size = 0x4, offset = 0x4, fixed_abs, tag = 'smem constant byte address 0x4 - core index']
  #allocation1 [shape = 'u32[144,128]{1,0:T(1,128)}', space=vmem, size = 0x12000, scoped, tag = 'internal scratch']
  %s0 = inlined_call_operand.vmem [shape: f32[16,18], index: 0, kind: input, shape index: {}]
  %s1 = inlined_call_operand.vmem [shape: bf16[18,128], index: 1, kind: input, shape index: {}]
  %s2 = inlined_call_operand.hbm [shape: bf16[2,128,128], index: 2, kind: input, shape index: {}]
  %s3 = inlined_call_operand.hbm [shape: f32[128,128], index: 3, kind: input, shape index: {}]
  %s4 = inlined_call_operand.vmem [shape: f32[8,128], index: 4, kind: input, shape index: {}]
  %s5 = inlined_call_operand.vmem [shape: bf16[16,128], index: 5, kind: output, shape index: {}]
  %s6 = sld [smem:[#allocation0]]
  $region38: #{dqn_forward.1} parent=0
    _
  %s8 = ssub.s32 1, %s6
  %s9 = scalar_select 0, %s8, %s6
  $region1: #{dqn_forward.1} parent=0
    #allocation2 [shape = 'u8[65536]{0}', space=vmem, size = 0x10000, scoped, tag = 'input window, operand 2, single buffered']
    #allocation3 [shape = 's32[1]{0}', space=sflag, size = 0x4, scoped, tag = 'scoped memory for dqn_forward.1']
    #allocation4 [shape = 'u8[65536]{0}', space=vmem, size = 0x10000, scoped, tag = 'input window, operand 3, single buffered']
    #allocation5 [shape = 's32[1]{0}', space=sflag, size = 0x4, scoped, tag = 'scoped memory for dqn_forward.1']
    %10 = vsyncpa [#allocation3], 0
    %11 = vsyncpa [#allocation5], 0
    // Predicated region
    $region2: #{dqn_forward.1} parent=1 // pred_check
      _
    $region3: #{dqn_forward.1} parent=1 // pred_check_branch
      %13 = sbr.rel (0) target = $region5
    $region4: #{dqn_forward.1} parent=1 // pred_region
      _
    $region5: #{dqn_forward.1} parent=1 // pred_fallthru
      _
    // Predicated region
    $region6: #{dqn_forward.1} parent=1 // pred_check
      _
    $region7: #{dqn_forward.1} parent=1 // pred_check_branch
      %15 = sbr.rel (0) target = $region9
    $region8: #{dqn_forward.1} parent=1 // pred_region
      _
    $region9: #{dqn_forward.1} parent=1 // pred_fallthru
      _
    // Predicated region
    $region10: #{dqn_forward.1} parent=1 // pred_check
      _
    $region11: #{dqn_forward.1} parent=1 // pred_check_branch
      %17 = sbr.rel (0) target = $region13
    $region12: #{dqn_forward.1} parent=1 // pred_region
      %s19 = ssub.s32 2048, 2048
      %20 = vsyncadd [#allocation3], %s19
      %s21 = sshll.u32 [#allocation2], 4
      %s22 = int_to_ptr.vmem [resolvable:$true] %s21
      %27 = dma.hbm_to_vmem [thread:$0]  %s2, 2048, %s22, [#allocation3], 64, 64, 4
    $region13: #{dqn_forward.1} parent=1 // pred_fallthru
      _
    // Predicated region
    $region14: #{dqn_forward.1} parent=1 // pred_check
      _
    $region15: #{dqn_forward.1} parent=1 // pred_check_branch
      %29 = sbr.rel (0) target = $region17
    $region16: #{dqn_forward.1} parent=1 // pred_region
      %s31 = ssub.s32 2048, 2048
      %32 = vsyncadd [#allocation5], %s31
      %s33 = sshll.u32 [#allocation4], 4
      %s34 = int_to_ptr.vmem [resolvable:$true] %s33
      %39 = dma.hbm_to_vmem [thread:$0]  %s3, 2048, %s34, [#allocation5], 128, 128, 8
    $region17: #{dqn_forward.1} parent=1 // pred_fallthru
      _
    // Predicated region
    $region18: #{dqn_forward.1} parent=1 // pred_check
      _
    $region19: #{dqn_forward.1} parent=1 // pred_check_branch
      %41 = sbr.rel (0) target = $region21
    $region20: #{dqn_forward.1} parent=1 // pred_region
      _
    $region21: #{dqn_forward.1} parent=1 // pred_fallthru
      _
    // Predicated region
    $region22: #{dqn_forward.1} parent=1 // pred_check
      _
    $region23: #{dqn_forward.1} parent=1 // pred_check_branch
      %43 = sbr.rel (0) target = $region25
    $region24: #{dqn_forward.1} parent=1 // pred_region
      %44 = dma.done [#allocation3], 2048
    $region25: #{dqn_forward.1} parent=1 // pred_fallthru
      _
    // Predicated region
    $region26: #{dqn_forward.1} parent=1 // pred_check
      _
    $region27: #{dqn_forward.1} parent=1 // pred_check_branch
      %46 = sbr.rel (0) target = $region29
    $region28: #{dqn_forward.1} parent=1 // pred_region
      %47 = dma.done [#allocation5], 2048
    $region29: #{dqn_forward.1} parent=1 // pred_fallthru
      _
    %v49 = vld [vmem:[%s4] sm:$0xff]
    %v50 = vld [vmem:[%s0] sm:$0xff]
    %v51 = vld [vmem:[%s0 + $0x8] sm:$0xff]
    %v52 = vpack.c.bf16 %v51, %v50
    %v53 = vld [vmem:[%s1] sm:$0xf]
    %v54 = vld [vmem:[%s1 + $0x4] sm:$0xf]
    %v55 = vld [vmem:[%s1 + $0x8] sm:$0x1]
    %v56 = vlaneseq
    %v57 = vshrl.u32 %v56, 7
    %v58 = vsub.s32 0, %v57
    %v59 = vrot.slane %v49, %v58
    %v63 = vunpack.c.l.b16 %v53
    %v64 = vunpack.c.l.b16 %v54
    %v65 = vunpack.c.l.b16 %v55
    %v66 = vpack.c.b16 %v64, %v63
    %v67 = vpack.c.b16 %v65, %v65
    %vm69 = vcmask 146432
    %v71 = vsel %vm69, %v52, 0
    %vm73 = vcmask 1040384
    %v75 = vsel %vm73, %v67, 0
    %77 = vmatprep.subr.bf16.mxu0 0
    %78 = vmatpush1.bf16.msra.mxu0 %v66
    %79 = vmatprep.subr.bf16.mxu0 0
    %80 = vmatpush1.bf16.msra.mxu0 %v75
    %81 = vmatprep.subr.bf16.mxu0 0
    %82 = vmatpush1.bf16.msra.mxu0 0
    %83 = vmatprep.subr.bf16.mxu0 0
    %84 = vmatpush1.bf16.msra.mxu0 0
    %85 = vmatprep.subr.bf16.mxu0 0
    %86 = vmatpush1.bf16.msra.mxu0 0
    %87 = vmatprep.subr.bf16.mxu0 0
    %88 = vmatpush1.bf16.msra.mxu0 0
    %89 = vmatprep.subr.bf16.mxu0 0
    %90 = vmatpush1.bf16.msra.mxu0 0
    %91 = vmatprep.subr.bf16.mxu0 0
    %92 = vmatpush1.bf16.msra.mxu0 0
    %93 = vmatprep.subr.bf16.mxu0 0
    %94 = vmatpush1.bf16.msra.mxu0 0
    %95 = vmatprep.subr.bf16.mxu0 0
    %96 = vmatpush1.bf16.msra.mxu0 0
    %97 = vmatprep.subr.bf16.mxu0 0
    %98 = vmatpush1.bf16.msra.mxu0 0
    %99 = vmatprep.subr.bf16.mxu0 0
    %100 = vmatpush1.bf16.msra.mxu0 0
    %101 = vmatprep.subr.bf16.mxu0 0
    %102 = vmatpush1.bf16.msra.mxu0 0
    %103 = vmatprep.subr.bf16.mxu0 0
    %104 = vmatpush1.bf16.msra.mxu0 0
    %105 = vmatprep.subr.bf16.mxu0 0
    %106 = vmatpush1.bf16.msra.mxu0 0
    %107 = vmatprep.subr.bf16.mxu0 0
    %108 = vmatpush1.bf16.msra.mxu0 0
    %109 = vmatprep.mubr.bf16.mxu0 0
    %110 = vmatmul.mubr.bf16.gmra.mrb[0].mxu0 %v71
    %v111 = vpop.f32.mrb[0].mxu0
    %v112 = vadd.f32 %v59, %v111
    %v113 = vpop.f32.mrb[0].mxu0
    %v114 = vpop.f32.mrb[0].mxu0
    %v115 = vadd.f32 %v59, %v114
    %v116 = vpop.f32.mrb[0].mxu0
    %117 = vdwg.mxu0
    %v118 = vmax.f32 %v112, 0.0
    %v119 = vmax.f32 %v115, 0.0
    %v120 = vpack.c.bf16 %v119, %v118
    %v121 = vld [vmem:[#allocation2] sm:$0xf]
    %v122 = vld [vmem:[#allocation2 + $0x4] sm:$0xf]
    %v123 = vld [vmem:[#allocation2 + $0x8] sm:$0xf]
    %v124 = vld [vmem:[#allocation2 + $0xc] sm:$0xf]
    %v125 = vld [vmem:[#allocation2 + $0x10] sm:$0xf]
    %v126 = vld [vmem:[#allocation2 + $0x14] sm:$0xf]
    %v127 = vld [vmem:[#allocation2 + $0x18] sm:$0xf]
    %v128 = vld [vmem:[#allocation2 + $0x1c] sm:$0xf]
    %v129 = vld [vmem:[#allocation2 + $0x20] sm:$0xf]
    %v130 = vld [vmem:[#allocation2 + $0x24] sm:$0xf]
    %v131 = vld [vmem:[#allocation2 + $0x28] sm:$0xf]
    %v132 = vld [vmem:[#allocation2 + $0x2c] sm:$0xf]
    %v133 = vld [vmem:[#allocation2 + $0x30] sm:$0xf]
    %v134 = vld [vmem:[#allocation2 + $0x34] sm:$0xf]
    %v135 = vld [vmem:[#allocation2 + $0x38] sm:$0xf]
    %v136 = vld [vmem:[#allocation2 + $0x3c] sm:$0xf]
    %v137 = vlaneseq
    %v138 = vshrl.u32 %v137, 7
    %v139 = vsub.s32 1, %v138
    %v140 = vrot.slane %v49, %v139
    %v157 = vunpack.c.l.b16 %v121
    %v158 = vunpack.c.l.b16 %v122
    %v159 = vunpack.c.l.b16 %v123
    %v160 = vunpack.c.l.b16 %v124
    %v161 = vunpack.c.l.b16 %v125
    %v162 = vunpack.c.l.b16 %v126
    %v163 = vunpack.c.l.b16 %v127
    %v164 = vunpack.c.l.b16 %v128
    %v165 = vunpack.c.l.b16 %v129
    %v166 = vunpack.c.l.b16 %v130
    %v167 = vunpack.c.l.b16 %v131
    %v168 = vunpack.c.l.b16 %v132
    %v169 = vunpack.c.l.b16 %v133
    %v170 = vunpack.c.l.b16 %v134
    %v171 = vunpack.c.l.b16 %v135
    %v172 = vunpack.c.l.b16 %v136
    %v173 = vpack.c.b16 %v158, %v157
    %v174 = vpack.c.b16 %v160, %v159
    %v175 = vpack.c.b16 %v162, %v161
    %v176 = vpack.c.b16 %v164, %v163
    %v177 = vpack.c.b16 %v166, %v165
    %v178 = vpack.c.b16 %v168, %v167
    %v179 = vpack.c.b16 %v170, %v169
    %v180 = vpack.c.b16 %v172, %v171
    %189 = vmatprep.subr.bf16.mxu0 0
    %190 = vmatpush1.bf16.msra.mxu0 %v173
    %191 = vmatprep.subr.bf16.mxu0 0
    %192 = vmatpush1.bf16.msra.mxu0 %v174
    %193 = vmatprep.subr.bf16.mxu0 0
    %194 = vmatpush1.bf16.msra.mxu0 %v175
    %195 = vmatprep.subr.bf16.mxu0 0
    %196 = vmatpush1.bf16.msra.mxu0 %v176
    %197 = vmatprep.subr.bf16.mxu0 0
    %198 = vmatpush1.bf16.msra.mxu0 %v177
    %199 = vmatprep.subr.bf16.mxu0 0
    %200 = vmatpush1.bf16.msra.mxu0 %v178
    %201 = vmatprep.subr.bf16.mxu0 0
    %202 = vmatpush1.bf16.msra.mxu0 %v179
    %203 = vmatprep.subr.bf16.mxu0 0
    %204 = vmatpush1.bf16.msra.mxu0 %v180
    %205 = vmatprep.subr.bf16.mxu0 0
    %206 = vmatpush1.bf16.msra.mxu0 0
    %207 = vmatprep.subr.bf16.mxu0 0
    %208 = vmatpush1.bf16.msra.mxu0 0
    %209 = vmatprep.subr.bf16.mxu0 0
    %210 = vmatpush1.bf16.msra.mxu0 0
    %211 = vmatprep.subr.bf16.mxu0 0
    %212 = vmatpush1.bf16.msra.mxu0 0
    %213 = vmatprep.subr.bf16.mxu0 0
    %214 = vmatpush1.bf16.msra.mxu0 0
    %215 = vmatprep.subr.bf16.mxu0 0
    %216 = vmatpush1.bf16.msra.mxu0 0
    %217 = vmatprep.subr.bf16.mxu0 0
    %218 = vmatpush1.bf16.msra.mxu0 0
    %219 = vmatprep.subr.bf16.mxu0 0
    %220 = vmatpush1.bf16.msra.mxu0 0
    %221 = vmatprep.mubr.bf16.mxu0 0
    %222 = vmatmul.mubr.bf16.gmra.mrb[0].mxu0 %v120
    %v223 = vpop.f32.mrb[0].mxu0
    %v224 = vadd.f32 %v140, %v223
    %v225 = vpop.f32.mrb[0].mxu0
    %v226 = vpop.f32.mrb[0].mxu0
    %v227 = vadd.f32 %v140, %v226
    %v228 = vpop.f32.mrb[0].mxu0
    %229 = vdwg.mxu0
    %v230 = vmax.f32 %v224, 0.0
    %v231 = vmax.f32 %v227, 0.0
    %v232 = vpack.c.bf16 %v231, %v230
    %s233 = scalar_lea.vmem [#allocation2], 64
    %v234 = vld [vmem:[%s233] sm:$0xf]
    %v235 = vld [vmem:[%s233 + $0x4] sm:$0xf]
    %v236 = vld [vmem:[%s233 + $0x8] sm:$0xf]
    %v237 = vld [vmem:[%s233 + $0xc] sm:$0xf]
    %v238 = vld [vmem:[%s233 + $0x10] sm:$0xf]
    %v239 = vld [vmem:[%s233 + $0x14] sm:$0xf]
    %v240 = vld [vmem:[%s233 + $0x18] sm:$0xf]
    %v241 = vld [vmem:[%s233 + $0x1c] sm:$0xf]
    %v242 = vld [vmem:[%s233 + $0x20] sm:$0xf]
    %v243 = vld [vmem:[%s233 + $0x24] sm:$0xf]
    %v244 = vld [vmem:[%s233 + $0x28] sm:$0xf]
    %v245 = vld [vmem:[%s233 + $0x2c] sm:$0xf]
    %v246 = vld [vmem:[%s233 + $0x30] sm:$0xf]
    %v247 = vld [vmem:[%s233 + $0x34] sm:$0xf]
    %v248 = vld [vmem:[%s233 + $0x38] sm:$0xf]
    %v249 = vld [vmem:[%s233 + $0x3c] sm:$0xf]
    %v250 = vlaneseq
    %v251 = vshrl.u32 %v250, 7
    %v252 = vsub.s32 2, %v251
    %v253 = vrot.slane %v49, %v252
    %v270 = vunpack.c.l.b16 %v234
    %v271 = vunpack.c.l.b16 %v235
    %v272 = vunpack.c.l.b16 %v236
    %v273 = vunpack.c.l.b16 %v237
    %v274 = vunpack.c.l.b16 %v238
    %v275 = vunpack.c.l.b16 %v239
    %v276 = vunpack.c.l.b16 %v240
    %v277 = vunpack.c.l.b16 %v241
    %v278 = vunpack.c.l.b16 %v242
    %v279 = vunpack.c.l.b16 %v243
    %v280 = vunpack.c.l.b16 %v244
    %v281 = vunpack.c.l.b16 %v245
    %v282 = vunpack.c.l.b16 %v246
    %v283 = vunpack.c.l.b16 %v247
    %v284 = vunpack.c.l.b16 %v248
    %v285 = vunpack.c.l.b16 %v249
    %v286 = vpack.c.b16 %v271, %v270
    %v287 = vpack.c.b16 %v273, %v272
    %v288 = vpack.c.b16 %v275, %v274
    %v289 = vpack.c.b16 %v277, %v276
    %v290 = vpack.c.b16 %v279, %v278
    %v291 = vpack.c.b16 %v281, %v280
    %v292 = vpack.c.b16 %v283, %v282
    %v293 = vpack.c.b16 %v285, %v284
    %302 = vmatprep.subr.bf16.mxu0 0
    %303 = vmatpush1.bf16.msra.mxu0 %v286
    %304 = vmatprep.subr.bf16.mxu0 0
    %305 = vmatpush1.bf16.msra.mxu0 %v287
    %306 = vmatprep.subr.bf16.mxu0 0
    %307 = vmatpush1.bf16.msra.mxu0 %v288
    %308 = vmatprep.subr.bf16.mxu0 0
    %309 = vmatpush1.bf16.msra.mxu0 %v289
    %310 = vmatprep.subr.bf16.mxu0 0
    %311 = vmatpush1.bf16.msra.mxu0 %v290
    %312 = vmatprep.subr.bf16.mxu0 0
    %313 = vmatpush1.bf16.msra.mxu0 %v291
    %314 = vmatprep.subr.bf16.mxu0 0
    %315 = vmatpush1.bf16.msra.mxu0 %v292
    %316 = vmatprep.subr.bf16.mxu0 0
    %317 = vmatpush1.bf16.msra.mxu0 %v293
    %318 = vmatprep.subr.bf16.mxu0 0
    %319 = vmatpush1.bf16.msra.mxu0 0
    %320 = vmatprep.subr.bf16.mxu0 0
    %321 = vmatpush1.bf16.msra.mxu0 0
    %322 = vmatprep.subr.bf16.mxu0 0
    %323 = vmatpush1.bf16.msra.mxu0 0
    %324 = vmatprep.subr.bf16.mxu0 0
    %325 = vmatpush1.bf16.msra.mxu0 0
    %326 = vmatprep.subr.bf16.mxu0 0
    %327 = vmatpush1.bf16.msra.mxu0 0
    %328 = vmatprep.subr.bf16.mxu0 0
    %329 = vmatpush1.bf16.msra.mxu0 0
    %330 = vmatprep.subr.bf16.mxu0 0
    %331 = vmatpush1.bf16.msra.mxu0 0
    %332 = vmatprep.subr.bf16.mxu0 0
    %333 = vmatpush1.bf16.msra.mxu0 0
    %334 = vmatprep.mubr.bf16.mxu0 0
    %335 = vmatmul.mubr.bf16.gmra.mrb[0].mxu0 %v232
    %v336 = vpop.f32.mrb[0].mxu0
    %v337 = vadd.f32 %v253, %v336
    %v338 = vpop.f32.mrb[0].mxu0
    %v339 = vpop.f32.mrb[0].mxu0
    %v340 = vadd.f32 %v253, %v339
    %v341 = vpop.f32.mrb[0].mxu0
    %342 = vdwg.mxu0
    %v343 = vmax.f32 %v337, 0.0
    %v344 = vmax.f32 %v340, 0.0
    %v345 = vld [vmem:[#allocation4] sm:$0xff]
    %v346 = vld [vmem:[#allocation4 + $0x8] sm:$0xff]
    %v347 = vld [vmem:[#allocation4 + $0x10] sm:$0xff]
    %v348 = vld [vmem:[#allocation4 + $0x18] sm:$0xff]
    %v349 = vld [vmem:[#allocation4 + $0x20] sm:$0xff]
    %v350 = vld [vmem:[#allocation4 + $0x28] sm:$0xff]
    %v351 = vld [vmem:[#allocation4 + $0x30] sm:$0xff]
    %v352 = vld [vmem:[#allocation4 + $0x38] sm:$0xff]
    %v353 = vld [vmem:[#allocation4 + $0x40] sm:$0xff]
    %v354 = vld [vmem:[#allocation4 + $0x48] sm:$0xff]
    %v355 = vld [vmem:[#allocation4 + $0x50] sm:$0xff]
    %v356 = vld [vmem:[#allocation4 + $0x58] sm:$0xff]
    %v357 = vld [vmem:[#allocation4 + $0x60] sm:$0xff]
    %v358 = vld [vmem:[#allocation4 + $0x68] sm:$0xff]
    %v359 = vld [vmem:[#allocation4 + $0x70] sm:$0xff]
    %v360 = vld [vmem:[#allocation4 + $0x78] sm:$0xff]
    %v361 = vlaneseq
    %v362 = vshrl.u32 %v361, 7
    %v363 = vsub.s32 3, %v362
    %v364 = vrot.slane %v49, %v363
    %365 = vmatprep.subr.mxu0 0.0
    %366 = vmatpush1.msra.mxu0 %v345
    %367 = vmatprep.subr.mxu0 0.0
    %368 = vmatpush1.msra.mxu0 %v346
    %369 = vmatprep.subr.mxu0 0.0
    %370 = vmatpush1.msra.mxu0 %v347
    %371 = vmatprep.subr.mxu0 0.0
    %372 = vmatpush1.msra.mxu0 %v348
    %373 = vmatprep.subr.mxu0 0.0
    %374 = vmatpush1.msra.mxu0 %v349
    %375 = vmatprep.subr.mxu0 0.0
    %376 = vmatpush1.msra.mxu0 %v350
    %377 = vmatprep.subr.mxu0 0.0
    %378 = vmatpush1.msra.mxu0 %v351
    %379 = vmatprep.subr.mxu0 0.0
    %380 = vmatpush1.msra.mxu0 %v352
    %381 = vmatprep.subr.mxu0 0.0
    %382 = vmatpush1.msra.mxu0 %v353
    %383 = vmatprep.subr.mxu0 0.0
    %384 = vmatpush1.msra.mxu0 %v354
    %385 = vmatprep.subr.mxu0 0.0
    %386 = vmatpush1.msra.mxu0 %v355
    %387 = vmatprep.subr.mxu0 0.0
    %388 = vmatpush1.msra.mxu0 %v356
    %389 = vmatprep.subr.mxu0 0.0
    %390 = vmatpush1.msra.mxu0 %v357
    %391 = vmatprep.subr.mxu0 0.0
    %392 = vmatpush1.msra.mxu0 %v358
    %393 = vmatprep.subr.mxu0 0.0
    %394 = vmatpush1.msra.mxu0 %v359
    %395 = vmatprep.subr.mxu0 0.0
    %396 = vmatpush1.msra.mxu0 %v360
    %397 = vmatprep.subr.mxu0 0.0
    %398 = vmatpush1.msra.mxu0 0.0
    %399 = vmatprep.subr.mxu0 0.0
    %400 = vmatpush1.msra.mxu0 0.0
    %401 = vmatprep.subr.mxu0 0.0
    %402 = vmatpush1.msra.mxu0 0.0
    %403 = vmatprep.subr.mxu0 0.0
    %404 = vmatpush1.msra.mxu0 0.0
    %405 = vmatprep.subr.mxu0 0.0
    %406 = vmatpush1.msra.mxu0 0.0
    %407 = vmatprep.subr.mxu0 0.0
    %408 = vmatpush1.msra.mxu0 0.0
    %409 = vmatprep.subr.mxu0 0.0
    %410 = vmatpush1.msra.mxu0 0.0
    %411 = vmatprep.subr.mxu0 0.0
    %412 = vmatpush1.msra.mxu0 0.0
    %413 = vmatprep.subr.mxu0 0.0
    %414 = vmatpush1.msra.mxu0 0.0
    %415 = vmatprep.subr.mxu0 0.0
    %416 = vmatpush1.msra.mxu0 0.0
    %417 = vmatprep.subr.mxu0 0.0
    %418 = vmatpush1.msra.mxu0 0.0
    %419 = vmatprep.subr.mxu0 0.0
    %420 = vmatpush1.msra.mxu0 0.0
    %421 = vmatprep.subr.mxu0 0.0
    %422 = vmatpush1.msra.mxu0 0.0
    %423 = vmatprep.subr.mxu0 0.0
    %424 = vmatpush1.msra.mxu0 0.0
    %425 = vmatprep.subr.mxu0 0.0
    %426 = vmatpush1.msra.mxu0 0.0
    %427 = vmatprep.subr.mxu0 0.0
    %428 = vmatpush1.msra.mxu0 0.0
    %429 = vmatprep.mubr.f32.mxu0 0.0
    %430 = vmatmul.mubr.f32.gmra.mrb[0].mxu0 %v343
    %v431 = vpop.f32.mrb[0].mxu0
    %v432 = vadd.f32 %v364, %v431
    %v433 = vpop.f32.mrb[0].mxu0
    %434 = vmatprep.mubr.f32.mxu0 0.0
    %435 = vmatmul.mubr.f32.gmra.mrb[0].mxu0 %v344
    %v436 = vpop.f32.mrb[0].mxu0
    %v437 = vadd.f32 %v364, %v436
    %v438 = vpop.f32.mrb[0].mxu0
    %439 = vdwg.mxu0
    %v440 = vpack.c.bf16 %v437, %v432
    %v442 = vunpack.c.l.b16 %v440
    %v443 = vunpack.c.h.b16 %v440
    %v444 = vpack.c.b16 %v442, %v442
    %v445 = vpack.c.b16 %v443, %v443
    %448 = vst [vmem:[%s5] sm:$0xf] %v444
    %449 = vst [vmem:[%s5 + $0x4] sm:$0xf] %v445
    // Predicated region
    $region30: #{dqn_forward.1} parent=1 // pred_check
      _
    $region31: #{dqn_forward.1} parent=1 // pred_check_branch
      %451 = sbr.rel (0) target = $region33
    $region32: #{dqn_forward.1} parent=1 // pred_region
      _
    $region33: #{dqn_forward.1} parent=1 // pred_fallthru
      _
    // Predicated region
    $region34: #{dqn_forward.1} parent=1 // pred_check
      _
    $region35: #{dqn_forward.1} parent=1 // pred_check_branch
      %453 = sbr.rel (0) target = $region37
    $region36: #{dqn_forward.1} parent=1 // pred_region
      _
    $region37: #{dqn_forward.1} parent=1 // pred_fallthru
      _
    %454 = vsyncpa [#allocation3], 1
    %455 = vsyncpa [#allocation5], 1

</llo_original>
